<compile_context>
chip_gen: v7x
topology: tpu7x:2x2x1
jax: 0.10.0
libtpu: 0.0.40
codegen_flags: <defaults>
</compile_context>

<pallas_src>
import functools

import jax
import jax.numpy as jnp
import numpy as np
from jax.experimental import pallas as pl
from jax.experimental.pallas import tpu as pltpu

# Slab-size gate for the fused single-pass norm path (per grid step, f32).
# 4 MiB => worst case ~ 2x double-buffered in + 2x out + f32 temps < ~30 MiB.
_FUSE_LIMIT_BYTES = 4 << 20
# Raised scoped-VMEM limit (defaults are 16 MiB v5e / 32 MiB v6e/v7x).
_VMEM_LIMIT_BYTES = 48 * 1024 * 1024


# ---------------------------------------------------------------------------
# Helpers
# ---------------------------------------------------------------------------
def _pack_factor(C: int) -> int:
    """Number of feature-groups packed into one 128-lane row."""
    if C < 128 and 128 % C == 0:
        return 128 // C
    return 1


def _choose_tile_rows(R: int, L: int, target_bytes: int = 4 << 20) -> int:
    """Row tile: multiple of 8 (sublane rule) targeting ~target_bytes f32."""
    rows = max(8, (target_bytes // max(L * 4, 1)) // 8 * 8)
    if rows >= R:
        return int(R)            # full dim is always a legal block extent
    return int(rows)             # multiple of 8; partial last tile is masked


def _group_reduce(row, feat: int, groups: int):
    """row: (1, L) with L = groups*feat.  Returns (1, L) where lane l holds
    the sum over all `groups` packed groups for feature (l % feat), i.e. the
    per-feature total already replicated in the packed lane layout.  Uses XLU
    lane rotations only (free-ish slot), no reshapes."""
    if groups == 1:
        return row
    total = row
    for g in range(1, groups):
        total = total + pltpu.roll(row, shift=g * feat, axis=1)
    return total


# ---------------------------------------------------------------------------
# Kernels
# ---------------------------------------------------------------------------
def _norm_fused_kernel(x_ref, aw_ref, ab_ref, y_ref, mean_ref, std_ref, *,
                       eps, seq_len, feat, groups):
    """Single-pass-over-HBM norm: stats (two-pass in VMEM) + apply, one body."""
    xf = x_ref[0].astype(jnp.float32)                        # (R, L)
    col_sum = jnp.sum(xf, axis=0, keepdims=True)             # (1, L)
    mean = _group_reduce(col_sum, feat, groups) * (1.0 / seq_len)
    d = xf - mean                                            # exact two-pass var
    col_sq = jnp.sum(d * d, axis=0, keepdims=True)
    var = _group_reduce(col_sq, feat, groups) * (1.0 / seq_len)
    std = jnp.sqrt(var + eps)
    scale = aw_ref[...] * jax.lax.rsqrt(var + eps)           # affine fused in
    shift = ab_ref[...] - mean * scale
    y_ref[0] = (xf * scale + shift).astype(y_ref.dtype)
    mean_ref[0] = mean
    std_ref[0] = std


def _stats_kernel(x_ref, aw_ref, ab_ref,
                  mean_ref, std_ref, scale_ref, shift_ref,
                  sum_ref, sq_ref, *,
                  eps, seq_len, feat, groups, total_rows, tile_rows):
    """Tiled fallback: accumulate sum / sumsq over row tiles; finalize last."""
    r = pl.program_id(1)
    nr = pl.num_programs(1)

    @pl.when(r == 0)
    def _():
        sum_ref[...] = jnp.zeros_like(sum_ref)
        sq_ref[...] = jnp.zeros_like(sq_ref)

    x = x_ref[0].astype(jnp.float32)                         # (tile_rows, L)
    if total_rows % tile_rows != 0:                          # mask partial tile
        row = jax.lax.broadcasted_iota(jnp.int32, x.shape, 0)
        x = jnp.where(r * tile_rows + row < total_rows, x, 0.0)

    sum_ref[...] += jnp.sum(x, axis=0, keepdims=True)        # (1, L)
    sq_ref[...] += jnp.sum(x * x, axis=0, keepdims=True)     # (1, L)

    @pl.when(r == nr - 1)
    def _():
        inv_n = 1.0 / seq_len
        mean = _group_reduce(sum_ref[...], feat, groups) * inv_n
        e2 = _group_reduce(sq_ref[...], feat, groups) * inv_n
        # single-pass biased variance (matches unbiased=False), clamped >= 0.
        # TODO(synk): for |mean| >> std a shifted accumulation would be more
        # robust; the fused path (small slabs) already uses exact two-pass.
        var = jnp.maximum(e2 - mean * mean, 0.0)
        std = jnp.sqrt(var + eps)
        scale = aw_ref[...] * jax.lax.rsqrt(var + eps)
        shift = ab_ref[...] - mean * scale
        mean_ref[0] = mean
        std_ref[0] = std
        scale_ref[0] = scale
        shift_ref[0] = shift


def _apply_kernel(x_ref, scale_ref, shift_ref, y_ref):
    """y = x * scale + shift (normalize + affine fused into one FMA)."""
    x = x_ref[0].astype(jnp.float32)                         # (tile_rows, L)
    y_ref[0] = (x * scale_ref[0] + shift_ref[0]).astype(y_ref.dtype)


def _denorm_kernel(x_ref, w_ref, b_ref, mean_ref, std_ref, y_ref):
    """y = (x @ W_comb + b_comb) * std + mean  -- single pre-composed matmul."""
    x = x_ref[0].astype(w_ref.dtype)                         # (tile_t, C)
    h = jnp.dot(x, w_ref[...], preferred_element_type=jnp.float32)
    h = h + b_ref[...]
    y_ref[0] = (h * std_ref[0] + mean_ref[0]).astype(y_ref.dtype)


# ---------------------------------------------------------------------------
# pallas_call wrappers
# ---------------------------------------------------------------------------
def _norm_fused(xv, aw, ab, *, eps, seq_len, feat, groups):
    B, R, L = xv.shape
    kern = functools.partial(_norm_fused_kernel, eps=eps, seq_len=seq_len,
                             feat=feat, groups=groups)
    return pl.pallas_call(
        kern,
        out_shape=(jax.ShapeDtypeStruct((B, R, L), xv.dtype),
                   jax.ShapeDtypeStruct((B, 1, L), jnp.float32),
                   jax.ShapeDtypeStruct((B, 1, L), jnp.float32)),
        grid_spec=pltpu.PrefetchScalarGridSpec(
            num_scalar_prefetch=0,
            grid=(B,),
            in_specs=[
                pl.BlockSpec((1, R, L), lambda b: (b, 0, 0)),
                pl.BlockSpec((1, L), lambda b: (0, 0)),
                pl.BlockSpec((1, L), lambda b: (0, 0)),
            ],
            out_specs=[
                pl.BlockSpec((1, R, L), lambda b: (b, 0, 0)),
                pl.BlockSpec((1, 1, L), lambda b: (b, 0, 0)),
                pl.BlockSpec((1, 1, L), lambda b: (b, 0, 0)),
            ],
        ),
        compiler_params=pltpu.CompilerParams(
            dimension_semantics=("parallel",),
            vmem_limit_bytes=_VMEM_LIMIT_BYTES),
    )(xv, aw, ab)


def _norm_tiled(xv, aw, ab, *, eps, seq_len, feat, groups, tile_rows=None):
    B, R, L = xv.shape
    tile_r = tile_rows if tile_rows is not None else _choose_tile_rows(R, L)
    n_r = pl.cdiv(R, tile_r)

    stats_kern = functools.partial(
        _stats_kernel, eps=eps, seq_len=seq_len, feat=feat, groups=groups,
        total_rows=R, tile_rows=tile_r)
    mean, std, scale, shift = pl.pallas_call(
        stats_kern,
        out_shape=tuple(jax.ShapeDtypeStruct((B, 1, L), jnp.float32)
                        for _ in range(4)),
        grid_spec=pltpu.PrefetchScalarGridSpec(
            num_scalar_prefetch=0,
            grid=(B, n_r),
            in_specs=[
                pl.BlockSpec((1, tile_r, L), lambda b, r: (b, r, 0)),
                pl.BlockSpec((1, L), lambda b, r: (0, 0)),
                pl.BlockSpec((1, L), lambda b, r: (0, 0)),
            ],
            out_specs=[pl.BlockSpec((1, 1, L), lambda b, r: (b, 0, 0))] * 4,
            scratch_shapes=[pltpu.VMEM((1, L), jnp.float32)] * 2,
        ),
        compiler_params=pltpu.CompilerParams(
            dimension_semantics=("parallel", "arbitrary"),
            vmem_limit_bytes=_VMEM_LIMIT_BYTES),
    )(xv, aw, ab)

    y = pl.pallas_call(
        _apply_kernel,
        out_shape=jax.ShapeDtypeStruct((B, R, L), xv.dtype),
        grid_spec=pltpu.PrefetchScalarGridSpec(
            num_scalar_prefetch=0,
            grid=(B, n_r),
            in_specs=[
                pl.BlockSpec((1, tile_r, L), lambda b, r: (b, r, 0)),
                pl.BlockSpec((1, 1, L), lambda b, r: (b, 0, 0)),
                pl.BlockSpec((1, 1, L), lambda b, r: (b, 0, 0)),
            ],
            out_specs=pl.BlockSpec((1, tile_r, L), lambda b, r: (b, r, 0)),
        ),
        compiler_params=pltpu.CompilerParams(
            dimension_semantics=("parallel", "parallel"),
            vmem_limit_bytes=_VMEM_LIMIT_BYTES),
    )(xv, scale, shift)
    return y, mean, std


@functools.partial(jax.jit,
                   static_argnames=("eps", "fuse_limit_bytes", "tile_rows"))
def revin_norm(x, affine_weight, affine_bias, *, eps,
               fuse_limit_bytes=_FUSE_LIMIT_BYTES, tile_rows=None):
    B, T, C = x.shape
    groups = _pack_factor(C)
    packed = groups > 1 and (T * C) % 128 == 0
    if packed:
        # Lane-dense view: last dim becomes 128 lanes holding `groups`
        # consecutive time steps of all C features (contiguous reshape = free).
        L, R = 128, (T * C) // 128
        xv = x.reshape(B, R, L)
        aw = jnp.tile(affine_weight.reshape(1, C).astype(jnp.float32), (1, groups))
        ab = jnp.tile(affine_bias.reshape(1, C).astype(jnp.float32), (1, groups))
    else:
        groups = 1
        L, R = C, T
        xv = x
        aw = affine_weight.reshape(1, C).astype(jnp.float32)
        ab = affine_bias.reshape(1, C).astype(jnp.float32)

    if R * L * 4 <= fuse_limit_bytes:
        yv, mean_l, std_l = _norm_fused(xv, aw, ab, eps=eps, seq_len=T,
                                        feat=C, groups=groups)
    else:
        yv, mean_l, std_l = _norm_tiled(xv, aw, ab, eps=eps, seq_len=T,
                                        feat=C, groups=groups,
                                        tile_rows=tile_rows)

    y = yv.reshape(B, T, C)
    return y, mean_l[:, :, :C], std_l[:, :, :C]


@jax.jit
def revin_denorm(x, w_comb, b_comb, mean, std):
    B, T, C = x.shape
    tile_t = _choose_tile_rows(T, C)
    n_t = pl.cdiv(T, tile_t)
    return pl.pallas_call(
        _denorm_kernel,
        out_shape=jax.ShapeDtypeStruct((B, T, C), x.dtype),
        grid_spec=pltpu.PrefetchScalarGridSpec(
            num_scalar_prefetch=0,
            grid=(B, n_t),
            in_specs=[
                pl.BlockSpec((1, tile_t, C), lambda b, t: (b, t, 0)),   # x
                pl.BlockSpec((C, C), lambda b, t: (0, 0)),              # W_comb
                pl.BlockSpec((1, C), lambda b, t: (0, 0)),              # b_comb
                pl.BlockSpec((1, 1, C), lambda b, t: (b, 0, 0)),        # mean
                pl.BlockSpec((1, 1, C), lambda b, t: (b, 0, 0)),        # stdev
            ],
            out_specs=pl.BlockSpec((1, tile_t, C), lambda b, t: (b, t, 0)),
        ),
        compiler_params=pltpu.CompilerParams(
            dimension_semantics=("parallel", "parallel"),
            vmem_limit_bytes=_VMEM_LIMIT_BYTES),
    )(x, w_comb, b_comb, mean, std)


# ---------------------------------------------------------------------------
# Wrapper module
# ---------------------------------------------------------------------------
class RevINPallas:
    def __init__(self, num_features: int, eps: float = 1e-5, affine: bool = True,
                 subtract_last: bool = False, key=None,
                 matmul_dtype=jnp.float32):
        assert not subtract_last, "subtract_last=False is the configuration implemented"
        assert affine, "affine=True is the configuration implemented"
        self.num_features = num_features
        self.eps = float(eps)

        if key is None:
            key = jax.random.PRNGKey(0)
        k1, k2, k3, k4 = jax.random.split(key, 4)
        C = num_features
        bound = 1.0 / np.sqrt(C)

        # affine params (PyTorch init: ones / zeros)
        self.affine_weight = jnp.ones((1, C), jnp.float32)
        self.affine_bias = jnp.zeros((1, C), jnp.float32)
        # fc_denorm : Linear(C, C)   (weight shape (out, in), y = x W^T + b)
        self.w_denorm = jax.random.uniform(k1, (C, C), jnp.float32, -bound, bound)
        self.b_denorm = jax.random.uniform(k2, (1, C), jnp.float32, -bound, bound)
        # linear_layer2 : Linear(C, C)
        self.w_layer2 = jax.random.uniform(k3, (C, C), jnp.float32, -bound, bound)
        self.b_layer2 = jax.random.uniform(k4, (1, C), jnp.float32, -bound, bound)
        # TODO(synk): self.fc and self.linear_layer1 exist in the PyTorch
        # module's __init__ but are never used in forward(); omitted here.

        # One-time pre-composition of the denorm linear chain:
        #   y = ((x @ Wd^T + bd - ab) * inv) @ W2^T + b2,  inv = 1/(aw + eps^2)
        #     = x @ W_comb + b_comb
        inv = 1.0 / (self.affine_weight + self.eps * self.eps)     # (1, C)
        wd_t = self.w_denorm.T
        w2_t = self.w_layer2.T
        # matmul_dtype=jnp.bfloat16 halves W_comb DMA/VMEM and hits the fast
        # MXU path on v5e/v6e/v7x; f32 default keeps the self-test bit-tight.
        self.w_comb = ((wd_t * inv) @ w2_t).astype(matmul_dtype)    # (C, C)
        self.b_comb = ((self.b_denorm - self.affine_bias) * inv) @ w2_t + self.b_layer2

        # state (filled by norm)
        self.mean = None
        self.stdev = None

    def norm(self, x):
        y, mean, std = revin_norm(x, self.affine_weight, self.affine_bias,
                                  eps=self.eps)
        self.mean = mean
        self.stdev = std
        return y

    def denorm(self, x):
        assert self.mean is not None, "call norm() before denorm()"
        return revin_denorm(x, self.w_comb, self.b_comb, self.mean, self.stdev)

    def __call__(self, x, mode: str):
        if mode == "norm":
            return self.norm(x)
        elif mode == "denorm":
            return self.denorm(x)
        raise NotImplementedError(mode)


# ---------------------------------------------------------------------------
# Pure-JAX reference (mirrors the PyTorch forward, un-fused / un-composed)
# ---------------------------------------------------------------------------
def _ref_norm(x, m):
    mean = jnp.mean(x, axis=1, keepdims=True)
    var = jnp.mean((x - mean) ** 2, axis=1, keepdims=True)
    std = jnp.sqrt(var + m.eps)
    y = (x - mean) / std
    y = y * m.affine_weight[0] + m.affine_bias[0]
    return y, mean, std


def _ref_denorm(x, m, mean, std):
    h = x @ m.w_denorm.T + m.b_denorm[0]
    h = h - m.affine_bias[0]
    h = h / (m.affine_weight[0] + m.eps * m.eps)
    h = h @ m.w_layer2.T + m.b_layer2[0]
    return h * std + mean


def _ref_norm_params(x, aw, ab, eps):
    mean = jnp.mean(x, axis=1, keepdims=True)
    var = jnp.mean((x - mean) ** 2, axis=1, keepdims=True)
    std = jnp.sqrt(var + eps)
    return (x - mean) / std * aw.reshape(-1) + ab.reshape(-1), mean, std


if __name__ == "__main__":
    key = jax.random.PRNGKey(0)
    kx, kp, k2, k3, k4, k5 = jax.random.split(key, 6)

    # --- primary small test: fused single-pass, lane-packed (B=2,T=8,C=16) --
    B, T, C = 2, 8, 16
    x = jax.random.normal(kx, (B, T, C), jnp.float32) * 3.0 + 1.5
    revin = RevINPallas(num_features=C, key=kp)

    y_norm = revin(x, "norm")
    y_denorm = revin(y_norm, "denorm")
    jax.block_until_ready(y_norm)
    jax.block_until_ready(y_denorm)

    y_ref, mean_ref, std_ref = _ref_norm(x, revin)
    yd_ref = _ref_denorm(y_ref, revin, mean_ref, std_ref)
    np.testing.assert_allclose(np.asarray(revin.mean), np.asarray(mean_ref),
                               rtol=1e-5, atol=1e-5)
    np.testing.assert_allclose(np.asarray(revin.stdev), np.asarray(std_ref),
                               rtol=1e-5, atol=1e-5)
    np.testing.assert_allclose(np.asarray(y_norm), np.asarray(y_ref),
                               rtol=1e-5, atol=1e-5)
    np.testing.assert_allclose(np.asarray(y_denorm), np.asarray(yd_ref),
                               rtol=1e-4, atol=1e-4)

    # --- secondary: tiled fallback (forced), lane-packed, multi-step
    #     accumulation + masked partial last tile (T=72,C=16 -> R=9, tile 8) --
    xb = jax.random.normal(k2, (2, 72, 16), jnp.float32) * 2.0 - 0.5
    awb = jax.random.uniform(k3, (1, 16), jnp.float32, 0.5, 1.5)
    abb = jax.random.normal(k4, (1, 16), jnp.float32)
    yb, mb, sb = revin_norm(xb, awb, abb, eps=1e-5,
                            fuse_limit_bytes=0, tile_rows=8)
    jax.block_until_ready(yb)
    yb_ref, mb_ref, sb_ref = _ref_norm_params(xb, awb, abb, 1e-5)
    np.testing.assert_allclose(np.asarray(yb), np.asarray(yb_ref),
                               rtol=1e-4, atol=1e-4)
    np.testing.assert_allclose(np.asarray(mb), np.asarray(mb_ref),
                               rtol=1e-4, atol=1e-4)
    np.testing.assert_allclose(np.asarray(sb), np.asarray(sb_ref),
                               rtol=1e-4, atol=1e-4)

    # --- secondary: fused, un-packed path (C=12 does not divide 128, odd T) --
    xc = jax.random.normal(k5, (2, 9, 12), jnp.float32) + 0.7
    awc = jnp.ones((1, 12), jnp.float32)
    abc = jnp.zeros((1, 12), jnp.float32)
    yc, mc, sc = revin_norm(xc, awc, abc, eps=1e-5)
    jax.block_until_ready(yc)
    yc_ref, _, _ = _ref_norm_params(xc, awc, abc, 1e-5)
    np.testing.assert_allclose(np.asarray(yc), np.asarray(yc_ref),
                               rtol=1e-4, atol=1e-4)

    print("KERNEL_OK")
</pallas_src>

<mosaic_0001>
module attributes {stable_mosaic.version = 11 : i64} {
  func.func @_norm_fused_kernel(%arg0: i32, %arg1: memref<1x1x128xf32, #tpu.memory_space<vmem>>, %arg2: memref<1x128xf32, #tpu.memory_space<vmem>>, %arg3: memref<1x128xf32, #tpu.memory_space<vmem>>, %arg4: memref<1x1x128xf32, #tpu.memory_space<vmem>>, %arg5: memref<1x1x128xf32, #tpu.memory_space<vmem>>, %arg6: memref<1x1x128xf32, #tpu.memory_space<vmem>>) attributes {dimension_semantics = [#tpu.dimension_semantics<parallel>], iteration_bounds = array<i64: 2>, scalar_prefetch = 0 : i64, scratch_operands = 0 : i64, tpu.core_type = #tpu.core_type<tc>, window_params = [{transform_indices = @transform_0, window_bounds = array<i64: 1, 1, 128>}, {pipeline_mode = #tpu.pipeline_mode<synchronous>, transform_indices = @transform_1, window_bounds = array<i64: 1, 128>}, {pipeline_mode = #tpu.pipeline_mode<synchronous>, transform_indices = @transform_2, window_bounds = array<i64: 1, 128>}, {transform_indices = @transform_3, window_bounds = array<i64: 1, 1, 128>}, {transform_indices = @transform_4, window_bounds = array<i64: 1, 1, 128>}, {transform_indices = @transform_5, window_bounds = array<i64: 1, 1, 128>}]} {
    %c0 = arith.constant 0 : index
    %c0_0 = arith.constant 0 : index
    %c0_1 = arith.constant 0 : index
    %0 = vector.load %arg1[%c0, %c0_0, %c0_1] : memref<1x1x128xf32, #tpu.memory_space<vmem>>, vector<1x1x128xf32>
    %1 = vector.shape_cast %0 : vector<1x1x128xf32> to vector<1x128xf32>
    %cst = arith.constant dense<0.000000e+00> : vector<128xf32>
    %2 = vector.multi_reduction <add>, %1, %cst [0] : vector<1x128xf32> to vector<128xf32>
    %3 = vector.shape_cast %2 : vector<128xf32> to vector<1x128xf32>
    %c16_i32 = arith.constant 16 : i32
    %4 = tpu.dynamic_rotate %3 by %c16_i32 dim 1 : vector<1x128xf32>, i32 -> vector<1x128xf32>
    %5 = arith.addf %3, %4 : vector<1x128xf32>
    %c32_i32 = arith.constant 32 : i32
    %6 = tpu.dynamic_rotate %3 by %c32_i32 dim 1 : vector<1x128xf32>, i32 -> vector<1x128xf32>
    %7 = arith.addf %5, %6 : vector<1x128xf32>
    %c48_i32 = arith.constant 48 : i32
    %8 = tpu.dynamic_rotate %3 by %c48_i32 dim 1 : vector<1x128xf32>, i32 -> vector<1x128xf32>
    %9 = arith.addf %7, %8 : vector<1x128xf32>
    %c64_i32 = arith.constant 64 : i32
    %10 = tpu.dynamic_rotate %3 by %c64_i32 dim 1 : vector<1x128xf32>, i32 -> vector<1x128xf32>
    %11 = arith.addf %9, %10 : vector<1x128xf32>
    %c80_i32 = arith.constant 80 : i32
    %12 = tpu.dynamic_rotate %3 by %c80_i32 dim 1 : vector<1x128xf32>, i32 -> vector<1x128xf32>
    %13 = arith.addf %11, %12 : vector<1x128xf32>
    %c96_i32 = arith.constant 96 : i32
    %14 = tpu.dynamic_rotate %3 by %c96_i32 dim 1 : vector<1x128xf32>, i32 -> vector<1x128xf32>
    %15 = arith.addf %13, %14 : vector<1x128xf32>
    %c112_i32 = arith.constant 112 : i32
    %16 = tpu.dynamic_rotate %3 by %c112_i32 dim 1 : vector<1x128xf32>, i32 -> vector<1x128xf32>
    %17 = arith.addf %15, %16 : vector<1x128xf32>
    %cst_2 = arith.constant 1.250000e-01 : f32
    %18 = vector.broadcast %cst_2 : f32 to vector<1x128xf32>
    %19 = arith.mulf %17, %18 : vector<1x128xf32>
    %20 = arith.subf %1, %19 : vector<1x128xf32>
    %21 = arith.mulf %20, %20 : vector<1x128xf32>
    %cst_3 = arith.constant dense<0.000000e+00> : vector<128xf32>
    %22 = vector.multi_reduction <add>, %21, %cst_3 [0] : vector<1x128xf32> to vector<128xf32>
    %23 = vector.shape_cast %22 : vector<128xf32> to vector<1x128xf32>
    %c16_i32_4 = arith.constant 16 : i32
    %24 = tpu.dynamic_rotate %23 by %c16_i32_4 dim 1 : vector<1x128xf32>, i32 -> vector<1x128xf32>
    %25 = arith.addf %23, %24 : vector<1x128xf32>
    %c32_i32_5 = arith.constant 32 : i32
    %26 = tpu.dynamic_rotate %23 by %c32_i32_5 dim 1 : vector<1x128xf32>, i32 -> vector<1x128xf32>
    %27 = arith.addf %25, %26 : vector<1x128xf32>
    %c48_i32_6 = arith.constant 48 : i32
    %28 = tpu.dynamic_rotate %23 by %c48_i32_6 dim 1 : vector<1x128xf32>, i32 -> vector<1x128xf32>
    %29 = arith.addf %27, %28 : vector<1x128xf32>
    %c64_i32_7 = arith.constant 64 : i32
    %30 = tpu.dynamic_rotate %23 by %c64_i32_7 dim 1 : vector<1x128xf32>, i32 -> vector<1x128xf32>
    %31 = arith.addf %29, %30 : vector<1x128xf32>
    %c80_i32_8 = arith.constant 80 : i32
    %32 = tpu.dynamic_rotate %23 by %c80_i32_8 dim 1 : vector<1x128xf32>, i32 -> vector<1x128xf32>
    %33 = arith.addf %31, %32 : vector<1x128xf32>
    %c96_i32_9 = arith.constant 96 : i32
    %34 = tpu.dynamic_rotate %23 by %c96_i32_9 dim 1 : vector<1x128xf32>, i32 -> vector<1x128xf32>
    %35 = arith.addf %33, %34 : vector<1x128xf32>
    %c112_i32_10 = arith.constant 112 : i32
    %36 = tpu.dynamic_rotate %23 by %c112_i32_10 dim 1 : vector<1x128xf32>, i32 -> vector<1x128xf32>
    %37 = arith.addf %35, %36 : vector<1x128xf32>
    %cst_11 = arith.constant 1.250000e-01 : f32
    %38 = vector.broadcast %cst_11 : f32 to vector<1x128xf32>
    %39 = arith.mulf %37, %38 : vector<1x128xf32>
    %cst_12 = arith.constant 9.99999974E-6 : f32
    %40 = vector.broadcast %cst_12 : f32 to vector<1x128xf32>
    %41 = arith.addf %39, %40 : vector<1x128xf32>
    %42 = math.sqrt %41 : vector<1x128xf32>
    %c0_13 = arith.constant 0 : index
    %c0_14 = arith.constant 0 : index
    %43 = vector.load %arg2[%c0_13, %c0_14] : memref<1x128xf32, #tpu.memory_space<vmem>>, vector<1x128xf32>
    %cst_15 = arith.constant 9.99999974E-6 : f32
    %44 = vector.broadcast %cst_15 : f32 to vector<1x128xf32>
    %45 = arith.addf %39, %44 : vector<1x128xf32>
    %46 = math.rsqrt %45 : vector<1x128xf32>
    %47 = arith.mulf %43, %46 : vector<1x128xf32>
    %c0_16 = arith.constant 0 : index
    %c0_17 = arith.constant 0 : index
    %48 = vector.load %arg3[%c0_16, %c0_17] : memref<1x128xf32, #tpu.memory_space<vmem>>, vector<1x128xf32>
    %49 = arith.mulf %19, %47 : vector<1x128xf32>
    %50 = arith.subf %48, %49 : vector<1x128xf32>
    %51 = arith.mulf %1, %47 : vector<1x128xf32>
    %52 = arith.addf %51, %50 : vector<1x128xf32>
    %c0_18 = arith.constant 0 : index
    %c0_19 = arith.constant 0 : index
    %c0_20 = arith.constant 0 : index
    %53 = vector.load %arg4[%c0_18, %c0_19, %c0_20] : memref<1x1x128xf32, #tpu.memory_space<vmem>>, vector<1x1x128xf32>
    %54 = vector.shape_cast %53 : vector<1x1x128xf32> to vector<1x128xf32>
    %55 = vector.shape_cast %52 : vector<1x128xf32> to vector<1x1x128xf32>
    tpu.vector_store %arg4[%c0_18, %c0_19, %c0_20], %55 {strides = array<i32>} : memref<1x1x128xf32, #tpu.memory_space<vmem>>, vector<1x1x128xf32>,
    %c0_21 = arith.constant 0 : index
    %c0_22 = arith.constant 0 : index
    %c0_23 = arith.constant 0 : index
    %56 = vector.load %arg5[%c0_21, %c0_22, %c0_23] : memref<1x1x128xf32, #tpu.memory_space<vmem>>, vector<1x1x128xf32>
    %57 = vector.shape_cast %56 : vector<1x1x128xf32> to vector<1x128xf32>
    %58 = vector.shape_cast %19 : vector<1x128xf32> to vector<1x1x128xf32>
    tpu.vector_store %arg5[%c0_21, %c0_22, %c0_23], %58 {strides = array<i32>} : memref<1x1x128xf32, #tpu.memory_space<vmem>>, vector<1x1x128xf32>,
    %c0_24 = arith.constant 0 : index
    %c0_25 = arith.constant 0 : index
    %c0_26 = arith.constant 0 : index
    %59 = vector.load %arg6[%c0_24, %c0_25, %c0_26] : memref<1x1x128xf32, #tpu.memory_space<vmem>>, vector<1x1x128xf32>
    %60 = vector.shape_cast %59 : vector<1x1x128xf32> to vector<1x128xf32>
    %61 = vector.shape_cast %42 : vector<1x128xf32> to vector<1x1x128xf32>
    tpu.vector_store %arg6[%c0_24, %c0_25, %c0_26], %61 {strides = array<i32>} : memref<1x1x128xf32, #tpu.memory_space<vmem>>, vector<1x1x128xf32>,
    return
  }
  func.func @transform_0(%arg0: i32) -> (i32, i32, i32) {
    %c0_i32 = arith.constant 0 : i32
    %c0_i32_0 = arith.constant 0 : i32
    %c0_i32_1 = arith.constant 0 : i32
    return %arg0, %c0_i32, %c0_i32_0 : i32, i32, i32
  }
  func.func @transform_1(%arg0: i32) -> (i32, i32) {
    %c0_i32 = arith.constant 0 : i32
    %c0_i32_0 = arith.constant 0 : i32
    %c0_i32_1 = arith.constant 0 : i32
    return %c0_i32, %c0_i32_0 : i32, i32
  }
  func.func @transform_2(%arg0: i32) -> (i32, i32) {
    %c0_i32 = arith.constant 0 : i32
    %c0_i32_0 = arith.constant 0 : i32
    %c0_i32_1 = arith.constant 0 : i32
    return %c0_i32, %c0_i32_0 : i32, i32
  }
  func.func @transform_3(%arg0: i32) -> (i32, i32, i32) {
    %c0_i32 = arith.constant 0 : i32
    %c0_i32_0 = arith.constant 0 : i32
    %c0_i32_1 = arith.constant 0 : i32
    return %arg0, %c0_i32, %c0_i32_0 : i32, i32, i32
  }
  func.func @transform_4(%arg0: i32) -> (i32, i32, i32) {
    %c0_i32 = arith.constant 0 : i32
    %c0_i32_0 = arith.constant 0 : i32
    %c0_i32_1 = arith.constant 0 : i32
    return %arg0, %c0_i32, %c0_i32_0 : i32, i32, i32
  }
  func.func @transform_5(%arg0: i32) -> (i32, i32, i32) {
    %c0_i32 = arith.constant 0 : i32
    %c0_i32_0 = arith.constant 0 : i32
    %c0_i32_1 = arith.constant 0 : i32
    return %arg0, %c0_i32, %c0_i32_0 : i32, i32, i32
  }
}

</mosaic_0001>

<llo_original>
// kernel: revin_norm.1
$region0: #{revin_norm.1}
  #allocation0 [shape = 'u32[]', space=smem, size = 0x4, offset = 0x4, fixed_abs, tag = 'smem constant byte address 0x4 - core index']
  #allocation1 [shape = 'u32[144,128]{1,0:T(1,128)}', space=vmem, size = 0x12000, scoped, tag = 'internal scratch']
  %s0 = inlined_call_operand.vmem [shape: f32[2,1,128], index: 0, kind: input, shape index: {}]
  %s1 = inlined_call_operand.vmem [shape: f32[1,128], index: 1, kind: input, shape index: {}]
  %s2 = inlined_call_operand.vmem [shape: f32[1,128], index: 2, kind: input, shape index: {}]
  %s3 = inlined_call_operand.vmem [shape: f32[2,1,128], index: 3, kind: output, shape index: {0}]
  %s4 = inlined_call_operand.hbm [shape: f32[2,1,128], index: 4, kind: output, shape index: {1}]
  %s5 = inlined_call_operand.hbm [shape: f32[2,1,128], index: 5, kind: output, shape index: {2}]
  %6 = xla_tuple %s3, %s4, %s5
  %s7 = sld [smem:[#allocation0]]
  $region61: #{revin_norm.1} parent=0
    _
  %s9 = ssub.s32 1, %s7
  %s10 = scalar_select 0, %s9, %s7
  $region1: #{revin_norm.1} parent=0
    #allocation2 [shape = 'u8[1024]{0}', space=vmem, size = 0x400, scoped, tag = 'output window, operand 1']
    #allocation3 [shape = 's32[2]{0}', space=sflag, size = 0x8, scoped, tag = 'scoped memory for revin_norm.1']
    #allocation4 [shape = 'u8[1024]{0}', space=vmem, size = 0x400, scoped, tag = 'output window, operand 2']
    #allocation5 [shape = 's32[2]{0}', space=sflag, size = 0x8, scoped, tag = 'scoped memory for revin_norm.1']
    %11 = vsyncpa [#allocation3], 0
    %s12 = scalar_lea.sflag [#allocation3], 1
    %13 = vsyncpa %s12, 0
    %14 = vsyncpa [#allocation5], 0
    %s15 = scalar_lea.sflag [#allocation5], 1
    %16 = vsyncpa %s15, 0
    loop: start=0, step=1, limit=4
    $region2: #{revin_norm.1} parent=1 // loop_pre_header
      _
    $region3: #{revin_norm.1} parent=1 // loop_header
      %s18 = sphi 0, %s22
      %p19 = scmp.ge.s32.totalorder %s18, 4
      %s28 = sphi 0, %s30
      %s31 = sphi 0, %s28
      %s32 = sphi 0, %s31
      %s48 = sphi 0, %s32
      %s52 = sphi 0, %s52
      %s54 = sphi 0, %s52
      %s55 = sphi 0, %s54
      %s69 = sphi 0, %s55
      %s73 = sphi 0, %s73
      %s75 = sphi 0, %s73
      %s76 = sphi 0, %s75
      %s90 = sphi 0, %s76
      %s96 = sphi 0, %s98
      %s99 = sphi 0, %s96
      %s100 = sphi 0, %s99
      %s116 = sphi 0, %s100
      %s122 = sphi 0, %s124
      %s125 = sphi 0, %s122
      %s126 = sphi 0, %s125
      %s142 = sphi 0, %s126
      %s148 = sphi 0, %s150
      %s151 = sphi 0, %s148
      %s152 = sphi 0, %s151
      %s168 = sphi 0, %s152
    $region4: #{revin_norm.1} parent=1 // loop_header_branch
      %21 = sbr.rel (%p19) target = $region8
    $region5: #{revin_norm.1} parent=1 // loop_body
      %s23 = ssub.s32 %s18, 1
      %s24 = ssub.s32 %s18, 2
      %s25 = sadd.s32 %s18, 1
      %s26 = ssub.s32 %s18, %s25
      %p27 = scmp.eq.s32.totalorder %s26, 0
      %s29 = sadd.s32 %s28, 1
      %s30 = scalar_select %p27, %s28, %s29
      %p33 = pneg %p27
      %p34 = scmp.eq.s32.totalorder %s18, 1
      %p35 = por %p33, %p34
      %p36 = scmp.ne.s32.totalorder %s28, %s31
      %p37 = scmp.eq.s32.totalorder %s18, 0
      %p38 = por %p36, %p37
      %p39 = scmp.ne.s32.totalorder %s28, %s31
      %p40 = scmp.eq.s32.totalorder %s23, 1
      %p41 = por %p39, %p40
      %p42 = scmp.ne.s32.totalorder %s31, %s32
      %p43 = scmp.eq.s32.totalorder %s23, 0
      %p44 = por %p42, %p43
      %p45 = scmp.ne.s32.totalorder %s31, %s32
      %p46 = scmp.eq.s32.totalorder %s24, 1
      %p47 = por %p45, %p46
      %p49 = scmp.ne.s32.totalorder %s32, %s48
      %p50 = scmp.eq.s32.totalorder %s24, 0
      %p51 = por %p49, %p50
      %s53 = sadd.s32 %s52, 1
      %p56 = scmp.eq.s32.totalorder %s18, 1
      %p57 = scmp.ne.s32.totalorder %s52, %s54
      %p58 = scmp.eq.s32.totalorder %s18, 0
      %p59 = por %p57, %p58
      %p60 = scmp.ne.s32.totalorder %s52, %s54
      %p61 = scmp.eq.s32.totalorder %s23, 1
      %p62 = por %p60, %p61
      %p63 = scmp.ne.s32.totalorder %s54, %s55
      %p64 = scmp.eq.s32.totalorder %s23, 0
      %p65 = por %p63, %p64
      %p66 = scmp.ne.s32.totalorder %s54, %s55
      %p67 = scmp.eq.s32.totalorder %s24, 1
      %p68 = por %p66, %p67
      %p70 = scmp.ne.s32.totalorder %s55, %s69
      %p71 = scmp.eq.s32.totalorder %s24, 0
      %p72 = por %p70, %p71
      %s74 = sadd.s32 %s73, 1
      %p77 = scmp.eq.s32.totalorder %s18, 1
      %p78 = scmp.ne.s32.totalorder %s73, %s75
      %p79 = scmp.eq.s32.totalorder %s18, 0
      %p80 = por %p78, %p79
      %p81 = scmp.ne.s32.totalorder %s73, %s75
      %p82 = scmp.eq.s32.totalorder %s23, 1
      %p83 = por %p81, %p82
      %p84 = scmp.ne.s32.totalorder %s75, %s76
      %p85 = scmp.eq.s32.totalorder %s23, 0
      %p86 = por %p84, %p85
      %p87 = scmp.ne.s32.totalorder %s75, %s76
      %p88 = scmp.eq.s32.totalorder %s24, 1
      %p89 = por %p87, %p88
      %p91 = scmp.ne.s32.totalorder %s76, %s90
      %p92 = scmp.eq.s32.totalorder %s24, 0
      %p93 = por %p91, %p92
      %s94 = ssub.s32 %s18, %s25
      %p95 = scmp.eq.s32.totalorder %s94, 0
      %s97 = sadd.s32 %s96, 1
      %s98 = scalar_select %p95, %s96, %s97
      %p101 = pneg %p95
      %p102 = scmp.eq.s32.totalorder %s18, 1
      %p103 = por %p101, %p102
      %p104 = scmp.ne.s32.totalorder %s96, %s99
      %p105 = scmp.eq.s32.totalorder %s18, 0
      %p106 = por %p104, %p105
      %p107 = scmp.ne.s32.totalorder %s96, %s99
      %p108 = scmp.eq.s32.totalorder %s23, 1
      %p109 = por %p107, %p108
      %p110 = scmp.ne.s32.totalorder %s99, %s100
      %p111 = scmp.eq.s32.totalorder %s23, 0
      %p112 = por %p110, %p111
      %p113 = scmp.ne.s32.totalorder %s99, %s100
      %p114 = scmp.eq.s32.totalorder %s24, 1
      %p115 = por %p113, %p114
      %p117 = scmp.ne.s32.totalorder %s100, %s116
      %p118 = scmp.eq.s32.totalorder %s24, 0
      %p119 = por %p117, %p118
      %s120 = ssub.s32 %s18, %s25
      %p121 = scmp.eq.s32.totalorder %s120, 0
      %s123 = sadd.s32 %s122, 1
      %s124 = scalar_select %p121, %s122, %s123
      %p127 = pneg %p121
      %p128 = scmp.eq.s32.totalorder %s18, 1
      %p129 = por %p127, %p128
      %p130 = scmp.ne.s32.totalorder %s122, %s125
      %p131 = scmp.eq.s32.totalorder %s18, 0
      %p132 = por %p130, %p131
      %p133 = scmp.ne.s32.totalorder %s122, %s125
      %p134 = scmp.eq.s32.totalorder %s23, 1
      %p135 = por %p133, %p134
      %p136 = scmp.ne.s32.totalorder %s125, %s126
      %p137 = scmp.eq.s32.totalorder %s23, 0
      %p138 = por %p136, %p137
      %p139 = scmp.ne.s32.totalorder %s125, %s126
      %p140 = scmp.eq.s32.totalorder %s24, 1
      %p141 = por %p139, %p140
      %p143 = scmp.ne.s32.totalorder %s126, %s142
      %p144 = scmp.eq.s32.totalorder %s24, 0
      %p145 = por %p143, %p144
      %s146 = ssub.s32 %s18, %s25
      %p147 = scmp.eq.s32.totalorder %s146, 0
      %s149 = sadd.s32 %s148, 1
      %s150 = scalar_select %p147, %s148, %s149
      %p153 = pneg %p147
      %p154 = scmp.eq.s32.totalorder %s18, 1
      %p155 = por %p153, %p154
      %p156 = scmp.ne.s32.totalorder %s148, %s151
      %p157 = scmp.eq.s32.totalorder %s18, 0
      %p158 = por %p156, %p157
      %p159 = scmp.ne.s32.totalorder %s148, %s151
      %p160 = scmp.eq.s32.totalorder %s23, 1
      %p161 = por %p159, %p160
      %p162 = scmp.ne.s32.totalorder %s151, %s152
      %p163 = scmp.eq.s32.totalorder %s23, 0
      %p164 = por %p162, %p163
      %p165 = scmp.ne.s32.totalorder %s151, %s152
      %p166 = scmp.eq.s32.totalorder %s24, 1
      %p167 = por %p165, %p166
      %p169 = scmp.ne.s32.totalorder %s152, %s168
      %p170 = scmp.eq.s32.totalorder %s24, 0
      %p171 = por %p169, %p170
      %p172 = scmp.le.s32.totalorder 1, %s18
      %p173 = scmp.lt.s32.totalorder %s18, 3
      %p174 = pnand %p172, %p173
      %p175 = pneg %p174
      // Predicated region
      $region9: #{revin_norm.1} parent=5 // pred_check
        _
      $region10: #{revin_norm.1} parent=5 // pred_check_branch
        %177 = sbr.rel (%p174) target = $region12
      $region11: #{revin_norm.1} parent=5 // pred_region
        %s178 = ssub.s32 %s18, 1
        // Predicated region
        $region13: #{revin_norm.1} parent=11 // pred_check
          %p179 = pneg %p65
        $region14: #{revin_norm.1} parent=11 // pred_check_branch
          %181 = sbr.rel (%p179) target = $region16
        $region15: #{revin_norm.1} parent=11 // pred_region
          _
        $region16: #{revin_norm.1} parent=11 // pred_fallthru
          _
        // Predicated region
        $region17: #{revin_norm.1} parent=11 // pred_check
          %p182 = pneg %p86
        $region18: #{revin_norm.1} parent=11 // pred_check_branch
          %184 = sbr.rel (%p182) target = $region20
        $region19: #{revin_norm.1} parent=11 // pred_region
          _
        $region20: #{revin_norm.1} parent=11 // pred_fallthru
          _
      $region12: #{revin_norm.1} parent=5 // pred_fallthru
        _
      %p185 = scmp.lt.s32.totalorder %s18, 2
      // Predicated region
      $region21: #{revin_norm.1} parent=5 // pred_check
        %p186 = pneg %p185
      $region22: #{revin_norm.1} parent=5 // pred_check_branch
        %188 = sbr.rel (%p186) target = $region24
      $region23: #{revin_norm.1} parent=5 // pred_region
        // Predicated region
        $region25: #{revin_norm.1} parent=23 // pred_check
          %p189 = pneg %p38
        $region26: #{revin_norm.1} parent=23 // pred_check_branch
          %191 = sbr.rel (%p189) target = $region28
        $region27: #{revin_norm.1} parent=23 // pred_region
          %p192 = scmp.lt.s32.totalorder %s18, 1
          %s193 = scalar_select %p192, %s18, 1
          %s194 = scalar_lea.vmem %s0, %s193
        $region28: #{revin_norm.1} parent=23 // pred_fallthru
          _
      $region24: #{revin_norm.1} parent=5 // pred_fallthru
        _
      %p195 = scmp.le.s32.totalorder 1, %s18
      %p196 = scmp.lt.s32.totalorder %s18, 3
      %p197 = pnand %p195, %p196
      %p198 = pneg %p197
      // Predicated region
      $region29: #{revin_norm.1} parent=5 // pred_check
        _
      $region30: #{revin_norm.1} parent=5 // pred_check_branch
        %200 = sbr.rel (%p197) target = $region32
      $region31: #{revin_norm.1} parent=5 // pred_region
        %s201 = ssub.s32 %s18, 1
        %p202 = scmp.lt.s32.totalorder %s23, 1
        %s203 = scalar_select %p202, %s23, 1
        %s204 = scalar_lea.vmem %s0, %s203
        %p205 = pneg %p44
        %p206 = pneg %p41
        %p207 = pneg %p65
        %p208 = pneg %p62
        %p209 = pneg %p86
        %p210 = pneg %p83
        %p211 = pneg %p112
        %p212 = pneg %p109
        %p213 = scmp.lt.s32.totalorder %s23, 1
        %s214 = scalar_select %p213, %s23, 1
        %s215 = scalar_lea.vmem %s3, %s214
        %p216 = pneg %p138
        %p217 = pneg %p135
        %s218 = sand.u32 %s125, 1
        %s219 = scalar_lea.sflag [#allocation3], %s218
        %s220 = sand.u32 %s125, 1
        %s221 = scalar_lea.vmem [#allocation2], %s220
        %p222 = pneg %p164
        %p223 = pneg %p161
        %s224 = sand.u32 %s151, 1
        %s225 = scalar_lea.sflag [#allocation5], %s224
        %s226 = sand.u32 %s151, 1
        %s227 = scalar_lea.vmem [#allocation4], %s226
        %p228 = scmp.lt.s32.totalorder %s23, 1
        %s229 = scalar_select %p228, %s23, 1
        %s230 = scalar_lea.vmem %s0, %s229
        %p231 = scmp.lt.s32.totalorder %s23, 1
        %s232 = scalar_select %p231, %s23, 1
        %s233 = scalar_lea.vmem %s3, %s232
        %v234 = vld [vmem:[%s230] sm:$0x1]
        %v235 = vadd.f32 %v234, 0.0
        %236 = vrot.lane.b32.xlu0 %v235, 16
        %v237 = vpop.permute.xlu0 %236
        %v238 = vadd.f32 %v235, %v237
        %239 = vrot.lane.b32.xlu0 %v235, 32
        %v240 = vpop.permute.xlu0 %239
        %v241 = vadd.f32 %v238, %v240
        %242 = vrot.lane.b32.xlu0 %v235, 48
        %v243 = vpop.permute.xlu0 %242
        %v244 = vadd.f32 %v241, %v243
        %245 = vrot.lane.b32.xlu0 %v235, 64
        %v246 = vpop.permute.xlu0 %245
        %v247 = vadd.f32 %v244, %v246
        %248 = vrot.lane.b32.xlu0 %v235, 80
        %v249 = vpop.permute.xlu0 %248
        %v250 = vadd.f32 %v247, %v249
        %251 = vrot.lane.b32.xlu0 %v235, 96
        %v252 = vpop.permute.xlu0 %251
        %v253 = vadd.f32 %v250, %v252
        %254 = vrot.lane.b32.xlu0 %v235, 112
        %v255 = vpop.permute.xlu0 %254
        %v256 = vadd.f32 %v253, %v255
        %v257 = vmul.f32 %v256, 0.125
        %v258 = vsub.f32 %v234, %v257
        %v259 = vmul.f32 %v258, %v258
        %v260 = vadd.f32 %v259, 0.0
        %261 = vrot.lane.b32.xlu0 %v260, 16
        %v262 = vpop.permute.xlu0 %261
        %v263 = vadd.f32 %v260, %v262
        %264 = vrot.lane.b32.xlu0 %v260, 32
        %v265 = vpop.permute.xlu0 %264
        %v266 = vadd.f32 %v263, %v265
        %267 = vrot.lane.b32.xlu0 %v260, 48
        %v268 = vpop.permute.xlu0 %267
        %v269 = vadd.f32 %v266, %v268
        %270 = vrot.lane.b32.xlu0 %v260, 64
        %v271 = vpop.permute.xlu0 %270
        %v272 = vadd.f32 %v269, %v271
        %273 = vrot.lane.b32.xlu0 %v260, 80
        %v274 = vpop.permute.xlu0 %273
        %v275 = vadd.f32 %v272, %v274
        %276 = vrot.lane.b32.xlu0 %v260, 96
        %v277 = vpop.permute.xlu0 %276
        %v278 = vadd.f32 %v275, %v277
        %279 = vrot.lane.b32.xlu0 %v260, 112
        %v280 = vpop.permute.xlu0 %279
        %v281 = vadd.f32 %v278, %v280
        %v282 = vmul.f32 %v281, 0.125
        %v283 = vadd.f32 %v282, 1e-05
        %v284 = vrsqrt.pop %v283
        %v285 = vmul.f32 %v283, %v284
        %vm286 = vcmp.eq.f32.partialorder %v283, inf
        %v287 = vsel %vm286, %v283, %v285
        %vm288 = vcmp.eq.f32.partialorder %v283, 0.0
        %v289 = vand.u32 %v283, 2147483648
        %v290 = vsel %vm288, %v289, %v287
        %v291 = vld [vmem:[%s1] sm:$0x1]
        %v292 = vrsqrt.pop %v283
        %v293 = vmul.f32 %v291, %v292
        %v294 = vld [vmem:[%s2] sm:$0x1]
        %v295 = vmul.f32 %v257, %v293
        %v296 = vsub.f32 %v294, %v295
        %v297 = vmul.f32 %v234, %v293
        %v298 = vadd.f32 %v297, %v296
        %299 = vst [vmem:[%s233] sm:$0x1] %v298
        %300 = vst [vmem:[%s221] sm:$0x1] %v257
        %301 = vst [vmem:[%s227] sm:$0x1] %v290
        %p302 = scmp.lt.s32.totalorder %s23, 1
        %s303 = scalar_select %p302, %s23, 1
        %s304 = scalar_lea.vmem %s3, %s303
        %s305 = sand.u32 %s125, 1
        %s306 = scalar_lea.sflag [#allocation3], %s305
        %s307 = sand.u32 %s125, 1
        %s308 = scalar_lea.vmem [#allocation2], %s307
        %s309 = sand.u32 %s151, 1
        %s310 = scalar_lea.sflag [#allocation5], %s309
        %s311 = sand.u32 %s151, 1
        %s312 = scalar_lea.vmem [#allocation4], %s311
        // Predicated region
        $region33: #{revin_norm.1} parent=31 // pred_check
          %p313 = pneg %p109
        $region34: #{revin_norm.1} parent=31 // pred_check_branch
          %315 = sbr.rel (%p313) target = $region36
        $region35: #{revin_norm.1} parent=31 // pred_region
          _
        $region36: #{revin_norm.1} parent=31 // pred_fallthru
          _
        // Predicated region
        $region37: #{revin_norm.1} parent=31 // pred_check
          %p316 = pneg %p135
        $region38: #{revin_norm.1} parent=31 // pred_check_branch
          %318 = sbr.rel (%p316) target = $region40
        $region39: #{revin_norm.1} parent=31 // pred_region
          %s320 = ssub.s32 16, 16
          %321 = vsyncadd %s306, %s320
          %s322 = smul.addr %s23, 16
          %s323 = scalar_lea.hbm %s4, %s322
          %s325 = sshll.u32 %s308, 4
          %s326 = int_to_ptr.vmem [resolvable:$true] %s325
          %328 = dma.vmem_to_hbm [thread:$0]  %s326, 16, %s323, %s306
        $region40: #{revin_norm.1} parent=31 // pred_fallthru
          _
        // Predicated region
        $region41: #{revin_norm.1} parent=31 // pred_check
          %p329 = pneg %p161
        $region42: #{revin_norm.1} parent=31 // pred_check_branch
          %331 = sbr.rel (%p329) target = $region44
        $region43: #{revin_norm.1} parent=31 // pred_region
          %s333 = ssub.s32 16, 16
          %334 = vsyncadd %s310, %s333
          %s335 = smul.addr %s23, 16
          %s336 = scalar_lea.hbm %s5, %s335
          %s338 = sshll.u32 %s312, 4
          %s339 = int_to_ptr.vmem [resolvable:$true] %s338
          %341 = dma.vmem_to_hbm [thread:$0]  %s339, 16, %s336, %s310
        $region44: #{revin_norm.1} parent=31 // pred_fallthru
          _
      $region32: #{revin_norm.1} parent=5 // pred_fallthru
        _
      %p342 = scmp.le.s32.totalorder 2, %s18
      // Predicated region
      $region45: #{revin_norm.1} parent=5 // pred_check
        %p343 = pneg %p342
      $region46: #{revin_norm.1} parent=5 // pred_check_branch
        %345 = sbr.rel (%p343) target = $region48
      $region47: #{revin_norm.1} parent=5 // pred_region
        %s346 = ssub.s32 %s18, 2
        // Predicated region
        $region49: #{revin_norm.1} parent=47 // pred_check
          %p347 = pneg %p115
        $region50: #{revin_norm.1} parent=47 // pred_check_branch
          %349 = sbr.rel (%p347) target = $region52
        $region51: #{revin_norm.1} parent=47 // pred_region
          %p350 = scmp.lt.s32.totalorder %s24, 1
          %s351 = scalar_select %p350, %s24, 1
          %s352 = scalar_lea.vmem %s3, %s351
        $region52: #{revin_norm.1} parent=47 // pred_fallthru
          _
        // Predicated region
        $region53: #{revin_norm.1} parent=47 // pred_check
          %p353 = pneg %p141
        $region54: #{revin_norm.1} parent=47 // pred_check_branch
          %355 = sbr.rel (%p353) target = $region56
        $region55: #{revin_norm.1} parent=47 // pred_region
          %s356 = sand.u32 %s126, 1
          %s357 = scalar_lea.sflag [#allocation3], %s356
          %s358 = sand.u32 %s126, 1
          %s359 = scalar_lea.vmem [#allocation2], %s358
          %360 = dma.done %s357, 16
        $region56: #{revin_norm.1} parent=47 // pred_fallthru
          _
        // Predicated region
        $region57: #{revin_norm.1} parent=47 // pred_check
          %p361 = pneg %p167
        $region58: #{revin_norm.1} parent=47 // pred_check_branch
          %363 = sbr.rel (%p361) target = $region60
        $region59: #{revin_norm.1} parent=47 // pred_region
          %s364 = sand.u32 %s152, 1
          %s365 = scalar_lea.sflag [#allocation5], %s364
          %s366 = sand.u32 %s152, 1
          %s367 = scalar_lea.vmem [#allocation4], %s366
          %368 = dma.done %s365, 16
        $region60: #{revin_norm.1} parent=47 // pred_fallthru
          _
      $region48: #{revin_norm.1} parent=5 // pred_fallthru
        _
    $region6: #{revin_norm.1} parent=1 // loop_footer
      %s22 = sadd.s32 1, %s18
    $region7: #{revin_norm.1} parent=1 // loop_footer_branch
      %17 = sbr.rel target = $region3
    $region8: #{revin_norm.1} parent=1 // loop_exit
      _
    %369 = vsyncpa [#allocation3], 1
    %s370 = scalar_lea.sflag [#allocation3], 1
    %371 = vsyncpa %s370, 1
    %372 = vsyncpa [#allocation5], 1
    %s373 = scalar_lea.sflag [#allocation5], 1
    %374 = vsyncpa %s373, 1

</llo_original>
